<compile_context>
chip_gen: v7x
topology: tpu7x:2x2x1
jax: 0.10.0
libtpu: 0.0.40
codegen_flags: <defaults>
</compile_context>

<pallas_src>
import functools

import jax
import jax.numpy as jnp
from jax import lax
from jax.experimental import pallas as pl
from jax.experimental.pallas import tpu as pltpu


def _round_up(x: int, m: int) -> int:
    return ((x + m - 1) // m) * m


def _proto_dist_loss_kernel(x1_ref, x2_ref, p_ref, o_ref, *, k_valid: int):
    """One batch tile: partial sum of ((||x1||^2-||x2||^2) - 2*(x1-x2)@p^T)^2."""
    x1 = x1_ref[...]                       # (TB, D)  native dtype
    x2 = x2_ref[...]                       # (TB, D)
    p = p_ref[...]                         # (K_pad, D)

    # Per-row squared-norm difference in f32 (VPU path).
    x1f = x1.astype(jnp.float32)
    x2f = x2.astype(jnp.float32)
    norm_diff = jnp.sum(x1f * x1f - x2f * x2f, axis=-1, keepdims=True)  # (TB, 1)

    # Single MXU matmul on the fused difference, f32 accumulation.
    xd = x1 - x2
    xp = lax.dot_general(
        xd, p,
        dimension_numbers=(((1,), (1,)), ((), ())),
        preferred_element_type=jnp.float32,
    )                                                                   # (TB, K_pad)

    # Mask the zero-padded prototype columns: their matmul contribution is 0,
    # but the broadcast norm term is not, so they must be zeroed before the sum.
    k_idx = lax.broadcasted_iota(jnp.int32, xp.shape, dimension=1)
    diff = jnp.where(k_idx < k_valid, norm_diff - 2.0 * xp, 0.0)

    # Zero-padded batch rows give norm_diff == 0 and xd == 0 -> diff == 0,
    # so no row mask is required.
    partial = jnp.sum(diff * diff)                                      # f32 scalar

    # Lane-dense per-tile output block; wrapper reads [:, 0, 0].
    o_ref[...] = jnp.broadcast_to(partial, o_ref.shape).astype(jnp.float32)


def _loss_pure_jax(x1, x2, prototype):
    x1 = x1.astype(jnp.float32)
    x2 = x2.astype(jnp.float32)
    p = prototype.astype(jnp.float32)
    norm_diff = jnp.sum(x1 * x1 - x2 * x2, axis=-1, keepdims=True)
    diff = norm_diff - 2.0 * (x1 - x2) @ p.T
    return jnp.mean(diff * diff)


def prototype_distances_loss(x1, x2, prototype, *, block_b: int = 256,
                             force_pallas: bool = False):
    """x1, x2: (B, D); prototype: (K, D) -> scalar float32 loss."""
    B, D = x1.shape
    K, Dp = prototype.shape
    assert x2.shape == (B, D) and Dp == D

    # Tiny problems: per-call / per-grid-step overhead dwarfs the work.
    if not force_pallas and B * K * D < (1 << 20):
        return _loss_pure_jax(x1, x2, prototype)

    # ---- padding / tiling choices -------------------------------------
    k_pad = _round_up(K, 128)                    # lane-dense MXU result
    tb = min(block_b, _round_up(B, 8))
    tb = _round_up(tb, 8)                        # sublane-aligned batch tile
    b_pad = _round_up(B, tb)
    num_tiles = b_pad // tb

    if b_pad != B:
        x1 = jnp.pad(x1, ((0, b_pad - B), (0, 0)))
        x2 = jnp.pad(x2, ((0, b_pad - B), (0, 0)))
    if k_pad != K:
        prototype = jnp.pad(prototype, ((0, k_pad - K), (0, 0)))

    kernel = functools.partial(_proto_dist_loss_kernel, k_valid=K)

    in_bytes = jnp.dtype(x1.dtype).itemsize
    p_bytes = jnp.dtype(prototype.dtype).itemsize
    cost = pl.CostEstimate(
        flops=2 * b_pad * D * k_pad + 6 * b_pad * k_pad + 4 * b_pad * D,
        transcendentals=0,
        bytes_accessed=2 * b_pad * D * in_bytes
        + k_pad * D * p_bytes
        + num_tiles * 8 * 128 * 4,
    )

    partials = pl.pallas_call(
        kernel,
        out_shape=jax.ShapeDtypeStruct((num_tiles, 8, 128), jnp.float32),
        grid=(num_tiles,),
        in_specs=[
            pl.BlockSpec((tb, D), lambda i: (i, 0)),
            pl.BlockSpec((tb, D), lambda i: (i, 0)),
            # Same block every step -> Pallas keeps it resident (no re-DMA).
            pl.BlockSpec((k_pad, D), lambda i: (0, 0)),
        ],
        out_specs=pl.BlockSpec((1, 8, 128), lambda i: (i, 0, 0)),
        compiler_params=pltpu.CompilerParams(
            # Independent partial sums per batch tile -> usable by both
            # TensorCores on v7x; sequential-but-pipelined on v5e/v6e.
            dimension_semantics=("parallel",),
            # Headroom under v7x's 64 MiB VMEM, above v5e's 16 MiB default.
            vmem_limit_bytes=40 * 1024 * 1024,
        ),
        cost_estimate=cost,
    )(x1, x2, prototype)

    total = jnp.sum(partials[:, 0, 0])
    return total / jnp.float32(B * K)


if __name__ == "__main__":
    key = jax.random.PRNGKey(0)
    k1, k2, k3, k4, k5, k6 = jax.random.split(key, 6)

    def ref(x1, x2, p):
        d1 = jnp.sum((x1[:, None, :] - p[None, :, :]) ** 2, axis=-1)
        d2 = jnp.sum((x2[:, None, :] - p[None, :, :]) ** 2, axis=-1)
        return jnp.mean((d1 - d2) ** 2)

    # --- toy shapes consistent with the module (force the Pallas path) -----
    B, D, K = 8, 32, 8
    x1 = jax.random.normal(k1, (B, D), dtype=jnp.float32)
    x2 = jax.random.normal(k2, (B, D), dtype=jnp.float32)
    prototype = jax.random.normal(k3, (K, D), dtype=jnp.float32)

    loss = prototype_distances_loss(x1, x2, prototype, force_pallas=True)
    jax.block_until_ready(loss)
    expected = ref(x1, x2, prototype)
    assert jnp.allclose(loss, expected, rtol=1e-5, atol=1e-4), (loss, expected)

    # --- multi-tile case: exercises batch padding, K padding/masking,
    #     and the parallel multi-step grid. -------------------------------
    B2, D2, K2 = 300, 256, 200
    y1 = jax.random.normal(k4, (B2, D2), dtype=jnp.float32)
    y2 = jax.random.normal(k5, (B2, D2), dtype=jnp.float32)
    proto2 = jax.random.normal(k6, (K2, D2), dtype=jnp.float32)

    loss2 = prototype_distances_loss(y1, y2, proto2, block_b=128,
                                     force_pallas=True)
    jax.block_until_ready(loss2)
    expected2 = ref(y1, y2, proto2)
    assert jnp.allclose(loss2, expected2, rtol=1e-4, atol=1e-3), (loss2, expected2)

    print("KERNEL_OK")
</pallas_src>

<mosaic_0001>
module attributes {stable_mosaic.version = 11 : i64} {
  func.func @_proto_dist_loss_kernel(%arg0: i32, %arg1: memref<8x32xf32, #tpu.memory_space<vmem>>, %arg2: memref<8x32xf32, #tpu.memory_space<vmem>>, %arg3: memref<128x32xf32, #tpu.memory_space<vmem>>, %arg4: memref<1x8x128xf32, #tpu.memory_space<vmem>>) attributes {dimension_semantics = [#tpu.dimension_semantics<parallel>], iteration_bounds = array<i64: 1>, scalar_prefetch = 0 : i64, scratch_operands = 0 : i64, tpu.core_type = #tpu.core_type<tc>, window_params = [{transform_indices = @transform_0, window_bounds = array<i64: 8, 32>}, {transform_indices = @transform_1, window_bounds = array<i64: 8, 32>}, {pipeline_mode = #tpu.pipeline_mode<synchronous>, transform_indices = @transform_2, window_bounds = array<i64: 128, 32>}, {transform_indices = @transform_3, window_bounds = array<i64: 1, 8, 128>}]} {
    %c0 = arith.constant 0 : index
    %c0_0 = arith.constant 0 : index
    %0 = vector.load %arg1[%c0, %c0_0] : memref<8x32xf32, #tpu.memory_space<vmem>>, vector<8x32xf32>
    %c0_1 = arith.constant 0 : index
    %c0_2 = arith.constant 0 : index
    %1 = vector.load %arg2[%c0_1, %c0_2] : memref<8x32xf32, #tpu.memory_space<vmem>>, vector<8x32xf32>
    %c0_3 = arith.constant 0 : index
    %c0_4 = arith.constant 0 : index
    %2 = vector.load %arg3[%c0_3, %c0_4] : memref<128x32xf32, #tpu.memory_space<vmem>>, vector<128x32xf32>
    %3 = arith.mulf %0, %0 : vector<8x32xf32>
    %4 = arith.mulf %1, %1 : vector<8x32xf32>
    %5 = arith.subf %3, %4 : vector<8x32xf32>
    %cst = arith.constant dense<0.000000e+00> : vector<8xf32>
    %6 = vector.multi_reduction <add>, %5, %cst [1] : vector<8x32xf32> to vector<8xf32>
    %7 = vector.shape_cast %6 : vector<8xf32> to vector<8x1xf32>
    %8 = arith.subf %0, %1 : vector<8x32xf32>
    %cst_5 = arith.constant dense<0.000000e+00> : vector<8x128xf32>
    %9 = tpu.matmul %8, %2, %cst_5 {dimension_numbers = #tpu.dot_dimension_numbers<[1], [1], [0], [0], [0, 0, 1, 0], [], []>} : vector<8x32xf32>, vector<128x32xf32>, vector<8x128xf32> -> vector<8x128xf32>
    %10 = tpu.iota {dimensions = array<i32: 1>} : vector<8x128xi32>
    %c8_i32 = arith.constant 8 : i32
    %11 = vector.broadcast %c8_i32 : i32 to vector<8x128xi32>
    %12 = arith.cmpi slt, %10, %11 : vector<8x128xi32>
    %cst_6 = arith.constant 2.000000e+00 : f32
    %13 = vector.broadcast %cst_6 : f32 to vector<8x128xf32>
    %14 = arith.mulf %13, %9 : vector<8x128xf32>
    %15 = vector.broadcast %7 : vector<8x1xf32> to vector<8x128xf32>
    %16 = arith.subf %15, %14 : vector<8x128xf32>
    %cst_7 = arith.constant 0.000000e+00 : f32
    %17 = vector.broadcast %cst_7 : f32 to vector<8x128xf32>
    %18 = arith.select %12, %16, %17 : vector<8x128xi1>, vector<8x128xf32>
    %19 = arith.mulf %18, %18 : vector<8x128xf32>
    %20 = vector.shape_cast %19 : vector<8x128xf32> to vector<1x8x128xf32>
    %cst_8 = arith.constant dense<0.000000e+00> : vector<1xf32>
    %21 = vector.multi_reduction <add>, %20, %cst_8 [1, 2] : vector<1x8x128xf32> to vector<1xf32>
    %22 = vector.shape_cast %21 : vector<1xf32> to vector<1x1x1xf32>
    %23 = vector.extract %22[0, 0, 0] : f32 from vector<1x1x1xf32>
    %24 = vector.broadcast %23 : f32 to vector<1x8x128xf32>
    %c0_9 = arith.constant 0 : index
    %c0_10 = arith.constant 0 : index
    %c0_11 = arith.constant 0 : index
    %25 = vector.load %arg4[%c0_9, %c0_10, %c0_11] : memref<1x8x128xf32, #tpu.memory_space<vmem>>, vector<1x8x128xf32>
    tpu.vector_store %arg4[%c0_9, %c0_10, %c0_11], %24 {strides = array<i32>} : memref<1x8x128xf32, #tpu.memory_space<vmem>>, vector<1x8x128xf32>,
    return
  }
  func.func @transform_0(%arg0: i32) -> (i32, i32) {
    %c0_i32 = arith.constant 0 : i32
    %c0_i32_0 = arith.constant 0 : i32
    return %arg0, %c0_i32 : i32, i32
  }
  func.func @transform_1(%arg0: i32) -> (i32, i32) {
    %c0_i32 = arith.constant 0 : i32
    %c0_i32_0 = arith.constant 0 : i32
    return %arg0, %c0_i32 : i32, i32
  }
  func.func @transform_2(%arg0: i32) -> (i32, i32) {
    %c0_i32 = arith.constant 0 : i32
    %c0_i32_0 = arith.constant 0 : i32
    %c0_i32_1 = arith.constant 0 : i32
    return %c0_i32, %c0_i32_0 : i32, i32
  }
  func.func @transform_3(%arg0: i32) -> (i32, i32, i32) {
    %c0_i32 = arith.constant 0 : i32
    %c0_i32_0 = arith.constant 0 : i32
    %c0_i32_1 = arith.constant 0 : i32
    return %arg0, %c0_i32, %c0_i32_0 : i32, i32, i32
  }
}

</mosaic_0001>

<llo_original>
// kernel: tpu_custom_call.1
$region0: #{tpu_custom_call.1}
  #allocation0 [shape = 'u32[]', space=smem, size = 0x4, offset = 0x4, fixed_abs, tag = 'smem constant byte address 0x4 - core index']
  #allocation1 [shape = 'u32[144,128]{1,0:T(1,128)}', space=vmem, size = 0x12000, scoped, tag = 'internal scratch']
  %s0 = inlined_call_operand.vmem [shape: f32[8,32], index: 0, kind: input, shape index: {}]
  %s1 = inlined_call_operand.vmem [shape: f32[8,32], index: 1, kind: input, shape index: {}]
  %s2 = inlined_call_operand.vmem [shape: f32[128,32], index: 2, kind: input, shape index: {}]
  %s3 = inlined_call_operand.hbm [shape: f32[1,8,128], index: 3, kind: output, shape index: {}]
  %s4 = sld [smem:[#allocation0]]
  $region22: #{tpu_custom_call.1} parent=0
    _
  %s6 = ssub.s32 1, %s4
  %s7 = scalar_select 0, %s6, %s4
  $region1: #{tpu_custom_call.1} parent=0
    #allocation2 [shape = 'u8[4096]{0}', space=vmem, size = 0x1000, scoped, tag = 'output window, operand 0, single buffered']
    #allocation3 [shape = 's32[1]{0}', space=sflag, size = 0x4, scoped, tag = 'scoped memory for tpu_custom_call.1']
    %8 = vsyncpa [#allocation3], 0
    // Predicated region
    $region2: #{tpu_custom_call.1} parent=1 // pred_check
      _
    $region3: #{tpu_custom_call.1} parent=1 // pred_check_branch
      %10 = sbr.rel (0) target = $region5
    $region4: #{tpu_custom_call.1} parent=1 // pred_region
      _
    $region5: #{tpu_custom_call.1} parent=1 // pred_fallthru
      _
    // Predicated region
    $region6: #{tpu_custom_call.1} parent=1 // pred_check
      _
    $region7: #{tpu_custom_call.1} parent=1 // pred_check_branch
      %12 = sbr.rel (0) target = $region9
    $region8: #{tpu_custom_call.1} parent=1 // pred_region
      _
    $region9: #{tpu_custom_call.1} parent=1 // pred_fallthru
      _
    // Predicated region
    $region10: #{tpu_custom_call.1} parent=1 // pred_check
      _
    $region11: #{tpu_custom_call.1} parent=1 // pred_check_branch
      %14 = sbr.rel (0) target = $region13
    $region12: #{tpu_custom_call.1} parent=1 // pred_region
      _
    $region13: #{tpu_custom_call.1} parent=1 // pred_fallthru
      _
    %v15 = vld [vmem:[%s0] sm:$0xff]
    %v16 = vld [vmem:[%s1] sm:$0xff]
    %v17 = vld [vmem:[%s2] sm:$0xff]
    %v18 = vld [vmem:[%s2 + $0x8] sm:$0xff]
    %v19 = vld [vmem:[%s2 + $0x10] sm:$0xff]
    %v20 = vld [vmem:[%s2 + $0x18] sm:$0xff]
    %v21 = vld [vmem:[%s2 + $0x20] sm:$0xff]
    %v22 = vld [vmem:[%s2 + $0x28] sm:$0xff]
    %v23 = vld [vmem:[%s2 + $0x30] sm:$0xff]
    %v24 = vld [vmem:[%s2 + $0x38] sm:$0xff]
    %v25 = vld [vmem:[%s2 + $0x40] sm:$0xff]
    %v26 = vld [vmem:[%s2 + $0x48] sm:$0xff]
    %v27 = vld [vmem:[%s2 + $0x50] sm:$0xff]
    %v28 = vld [vmem:[%s2 + $0x58] sm:$0xff]
    %v29 = vld [vmem:[%s2 + $0x60] sm:$0xff]
    %v30 = vld [vmem:[%s2 + $0x68] sm:$0xff]
    %v31 = vld [vmem:[%s2 + $0x70] sm:$0xff]
    %v32 = vld [vmem:[%s2 + $0x78] sm:$0xff]
    %v33 = vmul.f32 %v15, %v15
    %v34 = vmul.f32 %v16, %v16
    %v35 = vsub.f32 %v33, %v34
    %vm36 = vcmask 261120
    %v37 = vsel %vm36, %v35, 0.0
    %38 = vadd.xlane.f32.xlu0 %v37
    %v39 = vpop.xlane.xlu0 %38
    %v40 = vsub.f32 %v15, %v16
    %v42 = vsel %vm36, %v40, 0
    %v45 = vsel %vm36, %v17, 0
    %v48 = vsel %vm36, %v18, 0
    %v51 = vsel %vm36, %v19, 0
    %v54 = vsel %vm36, %v20, 0
    %v57 = vsel %vm36, %v21, 0
    %v60 = vsel %vm36, %v22, 0
    %v63 = vsel %vm36, %v23, 0
    %v66 = vsel %vm36, %v24, 0
    %v69 = vsel %vm36, %v25, 0
    %v72 = vsel %vm36, %v26, 0
    %v75 = vsel %vm36, %v27, 0
    %v78 = vsel %vm36, %v28, 0
    %v81 = vsel %vm36, %v29, 0
    %v84 = vsel %vm36, %v30, 0
    %v87 = vsel %vm36, %v31, 0
    %v90 = vsel %vm36, %v32, 0
    %92 = vmatprep.subr.mxu0 0.0
    %93 = vmatpush1.xpose.msra.mxu0 %v45
    %94 = vmatprep.subr.mxu0 0.0
    %95 = vmatpush1.xpose.msra.mxu0 %v48
    %96 = vmatprep.subr.mxu0 0.0
    %97 = vmatpush1.xpose.msra.mxu0 %v51
    %98 = vmatprep.subr.mxu0 0.0
    %99 = vmatpush1.xpose.msra.mxu0 %v54
    %100 = vmatprep.subr.mxu0 0.0
    %101 = vmatpush1.xpose.msra.mxu0 %v57
    %102 = vmatprep.subr.mxu0 0.0
    %103 = vmatpush1.xpose.msra.mxu0 %v60
    %104 = vmatprep.subr.mxu0 0.0
    %105 = vmatpush1.xpose.msra.mxu0 %v63
    %106 = vmatprep.subr.mxu0 0.0
    %107 = vmatpush1.xpose.msra.mxu0 %v66
    %108 = vmatprep.subr.mxu0 0.0
    %109 = vmatpush1.xpose.msra.mxu0 %v69
    %110 = vmatprep.subr.mxu0 0.0
    %111 = vmatpush1.xpose.msra.mxu0 %v72
    %112 = vmatprep.subr.mxu0 0.0
    %113 = vmatpush1.xpose.msra.mxu0 %v75
    %114 = vmatprep.subr.mxu0 0.0
    %115 = vmatpush1.xpose.msra.mxu0 %v78
    %116 = vmatprep.subr.mxu0 0.0
    %117 = vmatpush1.xpose.msra.mxu0 %v81
    %118 = vmatprep.subr.mxu0 0.0
    %119 = vmatpush1.xpose.msra.mxu0 %v84
    %120 = vmatprep.subr.mxu0 0.0
    %121 = vmatpush1.xpose.msra.mxu0 %v87
    %122 = vmatprep.subr.mxu0 0.0
    %123 = vmatpush1.xpose.msra.mxu0 %v90
    %124 = vmatprep.subr.mxu0 0.0
    %125 = vmatpush1.xpose.msra.mxu0 0.0
    %126 = vmatprep.subr.mxu0 0.0
    %127 = vmatpush1.xpose.msra.mxu0 0.0
    %128 = vmatprep.subr.mxu0 0.0
    %129 = vmatpush1.xpose.msra.mxu0 0.0
    %130 = vmatprep.subr.mxu0 0.0
    %131 = vmatpush1.xpose.msra.mxu0 0.0
    %132 = vmatprep.subr.mxu0 0.0
    %133 = vmatpush1.xpose.msra.mxu0 0.0
    %134 = vmatprep.subr.mxu0 0.0
    %135 = vmatpush1.xpose.msra.mxu0 0.0
    %136 = vmatprep.subr.mxu0 0.0
    %137 = vmatpush1.xpose.msra.mxu0 0.0
    %138 = vmatprep.subr.mxu0 0.0
    %139 = vmatpush1.xpose.msra.mxu0 0.0
    %140 = vmatprep.subr.mxu0 0.0
    %141 = vmatpush1.xpose.msra.mxu0 0.0
    %142 = vmatprep.subr.mxu0 0.0
    %143 = vmatpush1.xpose.msra.mxu0 0.0
    %144 = vmatprep.subr.mxu0 0.0
    %145 = vmatpush1.xpose.msra.mxu0 0.0
    %146 = vmatprep.subr.mxu0 0.0
    %147 = vmatpush1.xpose.msra.mxu0 0.0
    %148 = vmatprep.subr.mxu0 0.0
    %149 = vmatpush1.xpose.msra.mxu0 0.0
    %150 = vmatprep.subr.mxu0 0.0
    %151 = vmatpush1.xpose.msra.mxu0 0.0
    %152 = vmatprep.subr.mxu0 0.0
    %153 = vmatpush1.xpose.msra.mxu0 0.0
    %154 = vmatprep.subr.mxu0 0.0
    %155 = vmatpush1.xpose.msra.mxu0 0.0
    %156 = vmatprep.mubr.f32.mxu0 0.0
    %157 = vmatmul.mubr.f32.gmra.mrb[0].mxu0 %v42
    %v158 = vpop.f32.mrb[0].mxu0
    %v159 = vadd.f32 0.0, %v158
    %v160 = vpop.f32.mrb[0].mxu0
    %161 = vdwg.mxu0
    %v162 = vlaneseq
    %v163 = vand.u32 %v162, 127
    %vm164 = vcmp.lt.s32.totalorder %v163, 8
    %v165 = vmul.f32 %v159, 2.0
    %v166 = vsub.f32 %v39, %v165
    %v167 = vsel %vm164, %v166, 0.0
    %v168 = vmul.f32 %v167, %v167
    %169 = vadd.xlane.f32.xlu0 %v168
    %v170 = vpop.xlane.xlu0 %169
    %v171 = vrot.slane %v170, 4
    %v172 = vadd.f32 %v170, %v171
    %v173 = vrot.slane %v172, 2
    %v174 = vadd.f32 %v172, %v173
    %v175 = vrot.slane %v174, 1
    %v176 = vadd.f32 %v174, %v175
    %s177 = vtos %v176
    %v178 = vstv %s177
    %179 = vst [vmem:[#allocation2] sm:$0xff] %v178
    // Predicated region
    $region14: #{tpu_custom_call.1} parent=1 // pred_check
      _
    $region15: #{tpu_custom_call.1} parent=1 // pred_check_branch
      %181 = sbr.rel (0) target = $region17
    $region16: #{tpu_custom_call.1} parent=1 // pred_region
      %s183 = ssub.s32 128, 128
      %184 = vsyncadd [#allocation3], %s183
      %s186 = sshll.u32 [#allocation2], 4
      %s187 = int_to_ptr.vmem [resolvable:$true] %s186
      %189 = dma.vmem_to_hbm [thread:$0]  %s187, 128, %s3, [#allocation3]
    $region17: #{tpu_custom_call.1} parent=1 // pred_fallthru
      _
    // Predicated region
    $region18: #{tpu_custom_call.1} parent=1 // pred_check
      _
    $region19: #{tpu_custom_call.1} parent=1 // pred_check_branch
      %191 = sbr.rel (0) target = $region21
    $region20: #{tpu_custom_call.1} parent=1 // pred_region
      %192 = dma.done [#allocation3], 128
    $region21: #{tpu_custom_call.1} parent=1 // pred_fallthru
      _
    %193 = vsyncpa [#allocation3], 1

</llo_original>
